<compile_context>
chip_gen: v5e
topology: v5e:2x2
jax: 0.10.0
libtpu: 0.0.40
codegen_flags: <defaults>
</compile_context>

<pallas_src>
import jax
import jax.numpy as jnp
from jax.experimental import pallas as pl
from jax.experimental.pallas import tpu as pltpu  # noqa: F401  (TPU backend)

LEAKY_SLOPE = 0.2
BN_EPS = 1e-5


# ----------------------------------------------------------------------------
# Fused kernel: all hidden layers + concatenated (mean | log_var) head
# ----------------------------------------------------------------------------
def _make_fused_kernel(num_hidden):
    """Kernel refs: x, (w_i, gamma_i, beta_i) * num_hidden, w_head, b_head, out."""

    def kernel(*refs):
        x_ref = refs[0]
        w_head_ref = refs[-3]
        b_head_ref = refs[-2]
        o_ref = refs[-1]

        h = x_ref[...].astype(jnp.float32)
        for i in range(num_hidden):
            w_ref = refs[1 + 3 * i]
            g_ref = refs[2 + 3 * i]
            be_ref = refs[3 + 3 * i]

            # Linear (bias omitted: it is cancelled exactly by the BN mean
            # subtraction below).
            z = jnp.dot(h, w_ref[...], preferred_element_type=jnp.float32)

            # BatchNorm1d (training-mode batch stats, biased variance),
            # folded into one per-feature scale + shift.
            mu = jnp.mean(z, axis=0, keepdims=True)
            var = jnp.mean((z - mu) * (z - mu), axis=0, keepdims=True)
            scale = g_ref[...] * jax.lax.rsqrt(var + BN_EPS)
            shift = be_ref[...] - mu * scale
            zn = z * scale + shift

            # LeakyReLU
            h = jnp.where(zn >= 0, zn, LEAKY_SLOPE * zn)

        # Fused heads: [batch, 2*latent] = h @ [W_mean | W_logvar] + [b_m | b_v]
        out = jnp.dot(h, w_head_ref[...], preferred_element_type=jnp.float32)
        o_ref[...] = (out + b_head_ref[...]).astype(o_ref.dtype)

    return kernel


def _full_spec(shape):
    # Whole-array block resident in VMEM (shapes are tiny; single grid point).
    return pl.BlockSpec(shape, lambda: (0,) * len(shape))


# ----------------------------------------------------------------------------
# Forward wrapper (single pallas_call, single jit)
# ----------------------------------------------------------------------------
def _forward_impl(params, x):
    num_hidden = len(params["hidden"])
    latent_dim = params["mean"][0].shape[1]
    batch = x.shape[0]

    # Fuse mean/log_var heads into one lane-dense matmul.
    w_head = jnp.concatenate([params["mean"][0], params["log_var"][0]], axis=1)
    b_head = jnp.concatenate([params["mean"][1], params["log_var"][1]], axis=1)

    inputs = [x]
    for (w, _b, gamma, beta) in params["hidden"]:
        # hidden-layer bias dropped: cancelled by BatchNorm mean subtraction
        inputs.extend([w, gamma, beta])
    inputs.extend([w_head, b_head])

    out = pl.pallas_call(
        _make_fused_kernel(num_hidden),
        out_shape=jax.ShapeDtypeStruct((batch, 2 * latent_dim), jnp.float32),
        in_specs=[_full_spec(a.shape) for a in inputs],
        out_specs=_full_spec((batch, 2 * latent_dim)),
    )(*inputs)

    mean = out[:, :latent_dim]
    log_var = out[:, latent_dim:]
    return mean, log_var


probabilistic_encoder_forward = jax.jit(_forward_impl)


# ----------------------------------------------------------------------------
# Parameter construction (deterministic, synthetic)
# ----------------------------------------------------------------------------
def init_params(key, input_dim, hidden_dim, latent_dim):
    params = {"hidden": [], "mean": None, "log_var": None}
    dims = [input_dim] + list(hidden_dim)
    for i in range(len(hidden_dim)):
        key, kw, kb = jax.random.split(key, 3)
        fan_in, fan_out = dims[i], dims[i + 1]
        bound = 1.0 / jnp.sqrt(fan_in)
        w = jax.random.uniform(kw, (fan_in, fan_out), jnp.float32, -bound, bound)
        b = jax.random.uniform(kb, (1, fan_out), jnp.float32, -bound, bound)
        gamma = jnp.ones((1, fan_out), jnp.float32)
        beta = jnp.zeros((1, fan_out), jnp.float32)
        params["hidden"].append((w, b, gamma, beta))
    for name in ("mean", "log_var"):
        key, kw, kb = jax.random.split(key, 3)
        fan_in = hidden_dim[-1]
        bound = 1.0 / jnp.sqrt(fan_in)
        w = jax.random.uniform(kw, (fan_in, latent_dim), jnp.float32, -bound, bound)
        b = jax.random.uniform(kb, (1, latent_dim), jnp.float32, -bound, bound)
        params[name] = (w, b)
    return params


# ----------------------------------------------------------------------------
# Pure-JAX reference (uses the original, un-folded math incl. hidden bias)
# ----------------------------------------------------------------------------
def reference_forward(params, x):
    h = x
    for (w, b, gamma, beta) in params["hidden"]:
        z = h @ w + b
        mu = jnp.mean(z, axis=0, keepdims=True)
        var = jnp.mean((z - mu) ** 2, axis=0, keepdims=True)
        zn = (z - mu) / jnp.sqrt(var + BN_EPS) * gamma + beta
        h = jnp.where(zn >= 0, zn, LEAKY_SLOPE * zn)
    mean = h @ params["mean"][0] + params["mean"][1]
    log_var = h @ params["log_var"][0] + params["log_var"][1]
    return mean, log_var


if __name__ == "__main__":
    # Small shapes consistent with the module: x is [batch, input_dim].
    batch = 8
    input_dim = 32
    hidden_dim = [64, 48]
    latent_dim = 16

    key = jax.random.PRNGKey(0)
    key, kx = jax.random.split(key)
    x = jax.random.normal(kx, (batch, input_dim), jnp.float32)

    params = init_params(key, input_dim, hidden_dim, latent_dim)

    mean, log_var = probabilistic_encoder_forward(params, x)
    mean = jax.block_until_ready(mean)
    log_var = jax.block_until_ready(log_var)

    ref_mean, ref_log_var = reference_forward(params, x)
    assert mean.shape == (batch, latent_dim)
    assert log_var.shape == (batch, latent_dim)
    assert jnp.allclose(mean, ref_mean, atol=1e-4, rtol=1e-4)
    assert jnp.allclose(log_var, ref_log_var, atol=1e-4, rtol=1e-4)

    print("KERNEL_OK")
</pallas_src>

<mosaic_0001>
module attributes {stable_mosaic.version = 11 : i64} {
  func.func @kernel(%arg0: memref<8x32xf32, #tpu.memory_space<vmem>>, %arg1: memref<32x64xf32, #tpu.memory_space<vmem>>, %arg2: memref<1x64xf32, #tpu.memory_space<vmem>>, %arg3: memref<1x64xf32, #tpu.memory_space<vmem>>, %arg4: memref<64x48xf32, #tpu.memory_space<vmem>>, %arg5: memref<1x48xf32, #tpu.memory_space<vmem>>, %arg6: memref<1x48xf32, #tpu.memory_space<vmem>>, %arg7: memref<48x32xf32, #tpu.memory_space<vmem>>, %arg8: memref<1x32xf32, #tpu.memory_space<vmem>>, %arg9: memref<8x32xf32, #tpu.memory_space<vmem>>) attributes {dimension_semantics = [], scalar_prefetch = 0 : i64, scratch_operands = 0 : i64, tpu.core_type = #tpu.core_type<tc>} {
    %c0 = arith.constant 0 : index
    %c0_0 = arith.constant 0 : index
    %0 = vector.load %arg0[%c0, %c0_0] : memref<8x32xf32, #tpu.memory_space<vmem>>, vector<8x32xf32>
    %c0_1 = arith.constant 0 : index
    %c0_2 = arith.constant 0 : index
    %1 = vector.load %arg1[%c0_1, %c0_2] : memref<32x64xf32, #tpu.memory_space<vmem>>, vector<32x64xf32>
    %cst = arith.constant dense<0.000000e+00> : vector<8x64xf32>
    %2 = tpu.matmul %0, %1, %cst {dimension_numbers = #tpu.dot_dimension_numbers<[1], [0], [0], [1], [0, 0, 1, 1], [], []>} : vector<8x32xf32>, vector<32x64xf32>, vector<8x64xf32> -> vector<8x64xf32>
    %cst_3 = arith.constant dense<0.000000e+00> : vector<64xf32>
    %3 = vector.multi_reduction <add>, %2, %cst_3 [0] : vector<8x64xf32> to vector<64xf32>
    %4 = vector.shape_cast %3 : vector<64xf32> to vector<1x64xf32>
    %cst_4 = arith.constant 8.000000e+00 : f32
    %5 = vector.broadcast %cst_4 : f32 to vector<1x64xf32>
    %6 = arith.divf %4, %5 : vector<1x64xf32>
    %7 = vector.broadcast %6 : vector<1x64xf32> to vector<8x64xf32>
    %8 = arith.subf %2, %7 : vector<8x64xf32>
    %9 = vector.broadcast %6 : vector<1x64xf32> to vector<8x64xf32>
    %10 = arith.subf %2, %9 : vector<8x64xf32>
    %11 = arith.mulf %8, %10 : vector<8x64xf32>
    %cst_5 = arith.constant dense<0.000000e+00> : vector<64xf32>
    %12 = vector.multi_reduction <add>, %11, %cst_5 [0] : vector<8x64xf32> to vector<64xf32>
    %13 = vector.shape_cast %12 : vector<64xf32> to vector<1x64xf32>
    %cst_6 = arith.constant 8.000000e+00 : f32
    %14 = vector.broadcast %cst_6 : f32 to vector<1x64xf32>
    %15 = arith.divf %13, %14 : vector<1x64xf32>
    %c0_7 = arith.constant 0 : index
    %c0_8 = arith.constant 0 : index
    %16 = vector.load %arg2[%c0_7, %c0_8] : memref<1x64xf32, #tpu.memory_space<vmem>>, vector<1x64xf32>
    %cst_9 = arith.constant 9.99999974E-6 : f32
    %17 = vector.broadcast %cst_9 : f32 to vector<1x64xf32>
    %18 = arith.addf %15, %17 : vector<1x64xf32>
    %19 = math.rsqrt %18 : vector<1x64xf32>
    %20 = arith.mulf %16, %19 : vector<1x64xf32>
    %c0_10 = arith.constant 0 : index
    %c0_11 = arith.constant 0 : index
    %21 = vector.load %arg3[%c0_10, %c0_11] : memref<1x64xf32, #tpu.memory_space<vmem>>, vector<1x64xf32>
    %22 = arith.mulf %6, %20 : vector<1x64xf32>
    %23 = arith.subf %21, %22 : vector<1x64xf32>
    %24 = vector.broadcast %20 : vector<1x64xf32> to vector<8x64xf32>
    %25 = arith.mulf %2, %24 : vector<8x64xf32>
    %26 = vector.broadcast %23 : vector<1x64xf32> to vector<8x64xf32>
    %27 = arith.addf %25, %26 : vector<8x64xf32>
    %cst_12 = arith.constant 0.000000e+00 : f32
    %28 = vector.broadcast %cst_12 : f32 to vector<8x64xf32>
    %29 = arith.cmpf oge, %27, %28 : vector<8x64xf32>
    %cst_13 = arith.constant 2.000000e-01 : f32
    %30 = vector.broadcast %cst_13 : f32 to vector<8x64xf32>
    %31 = arith.mulf %30, %27 : vector<8x64xf32>
    %32 = arith.select %29, %27, %31 : vector<8x64xi1>, vector<8x64xf32>
    %c0_14 = arith.constant 0 : index
    %c0_15 = arith.constant 0 : index
    %33 = vector.load %arg4[%c0_14, %c0_15] : memref<64x48xf32, #tpu.memory_space<vmem>>, vector<64x48xf32>
    %cst_16 = arith.constant dense<0.000000e+00> : vector<8x48xf32>
    %34 = tpu.matmul %32, %33, %cst_16 {dimension_numbers = #tpu.dot_dimension_numbers<[1], [0], [0], [1], [0, 0, 1, 1], [], []>} : vector<8x64xf32>, vector<64x48xf32>, vector<8x48xf32> -> vector<8x48xf32>
    %cst_17 = arith.constant dense<0.000000e+00> : vector<48xf32>
    %35 = vector.multi_reduction <add>, %34, %cst_17 [0] : vector<8x48xf32> to vector<48xf32>
    %36 = vector.shape_cast %35 : vector<48xf32> to vector<1x48xf32>
    %cst_18 = arith.constant 8.000000e+00 : f32
    %37 = vector.broadcast %cst_18 : f32 to vector<1x48xf32>
    %38 = arith.divf %36, %37 : vector<1x48xf32>
    %39 = vector.broadcast %38 : vector<1x48xf32> to vector<8x48xf32>
    %40 = arith.subf %34, %39 : vector<8x48xf32>
    %41 = vector.broadcast %38 : vector<1x48xf32> to vector<8x48xf32>
    %42 = arith.subf %34, %41 : vector<8x48xf32>
    %43 = arith.mulf %40, %42 : vector<8x48xf32>
    %cst_19 = arith.constant dense<0.000000e+00> : vector<48xf32>
    %44 = vector.multi_reduction <add>, %43, %cst_19 [0] : vector<8x48xf32> to vector<48xf32>
    %45 = vector.shape_cast %44 : vector<48xf32> to vector<1x48xf32>
    %cst_20 = arith.constant 8.000000e+00 : f32
    %46 = vector.broadcast %cst_20 : f32 to vector<1x48xf32>
    %47 = arith.divf %45, %46 : vector<1x48xf32>
    %c0_21 = arith.constant 0 : index
    %c0_22 = arith.constant 0 : index
    %48 = vector.load %arg5[%c0_21, %c0_22] : memref<1x48xf32, #tpu.memory_space<vmem>>, vector<1x48xf32>
    %cst_23 = arith.constant 9.99999974E-6 : f32
    %49 = vector.broadcast %cst_23 : f32 to vector<1x48xf32>
    %50 = arith.addf %47, %49 : vector<1x48xf32>
    %51 = math.rsqrt %50 : vector<1x48xf32>
    %52 = arith.mulf %48, %51 : vector<1x48xf32>
    %c0_24 = arith.constant 0 : index
    %c0_25 = arith.constant 0 : index
    %53 = vector.load %arg6[%c0_24, %c0_25] : memref<1x48xf32, #tpu.memory_space<vmem>>, vector<1x48xf32>
    %54 = arith.mulf %38, %52 : vector<1x48xf32>
    %55 = arith.subf %53, %54 : vector<1x48xf32>
    %56 = vector.broadcast %52 : vector<1x48xf32> to vector<8x48xf32>
    %57 = arith.mulf %34, %56 : vector<8x48xf32>
    %58 = vector.broadcast %55 : vector<1x48xf32> to vector<8x48xf32>
    %59 = arith.addf %57, %58 : vector<8x48xf32>
    %cst_26 = arith.constant 0.000000e+00 : f32
    %60 = vector.broadcast %cst_26 : f32 to vector<8x48xf32>
    %61 = arith.cmpf oge, %59, %60 : vector<8x48xf32>
    %cst_27 = arith.constant 2.000000e-01 : f32
    %62 = vector.broadcast %cst_27 : f32 to vector<8x48xf32>
    %63 = arith.mulf %62, %59 : vector<8x48xf32>
    %64 = arith.select %61, %59, %63 : vector<8x48xi1>, vector<8x48xf32>
    %c0_28 = arith.constant 0 : index
    %c0_29 = arith.constant 0 : index
    %65 = vector.load %arg7[%c0_28, %c0_29] : memref<48x32xf32, #tpu.memory_space<vmem>>, vector<48x32xf32>
    %cst_30 = arith.constant dense<0.000000e+00> : vector<8x32xf32>
    %66 = tpu.matmul %64, %65, %cst_30 {dimension_numbers = #tpu.dot_dimension_numbers<[1], [0], [0], [1], [0, 0, 1, 1], [], []>} : vector<8x48xf32>, vector<48x32xf32>, vector<8x32xf32> -> vector<8x32xf32>
    %c0_31 = arith.constant 0 : index
    %c0_32 = arith.constant 0 : index
    %67 = vector.load %arg8[%c0_31, %c0_32] : memref<1x32xf32, #tpu.memory_space<vmem>>, vector<1x32xf32>
    %68 = vector.broadcast %67 : vector<1x32xf32> to vector<8x32xf32>
    %69 = arith.addf %66, %68 : vector<8x32xf32>
    %c0_33 = arith.constant 0 : index
    %c0_34 = arith.constant 0 : index
    %70 = vector.load %arg9[%c0_33, %c0_34] : memref<8x32xf32, #tpu.memory_space<vmem>>, vector<8x32xf32>
    tpu.vector_store %arg9[%c0_33, %c0_34], %69 {strides = array<i32>} : memref<8x32xf32, #tpu.memory_space<vmem>>, vector<8x32xf32>,
    return
  }
}

</mosaic_0001>

<llo_original>
// kernel: _forward_impl.1
$region0: #{_forward_impl.1}
  #allocation0 [shape = 'u32[]', space=smem, size = 0x4, offset = 0x4, fixed_abs, tag = 'smem constant byte address 0x4 - core index']
  #allocation1 [shape = 'u32[72,128]{1,0:T(1,128)}', space=vmem, size = 0x9000, scoped, tag = 'internal scratch']
  %s0 = inlined_call_operand.vmem [shape: f32[8,32], index: 0, kind: input, shape index: {}]
  %s1 = inlined_call_operand.vmem [shape: f32[32,64], index: 1, kind: input, shape index: {}]
  %s2 = inlined_call_operand.vmem [shape: f32[1,64], index: 2, kind: input, shape index: {}]
  %s3 = inlined_call_operand.vmem [shape: f32[1,64], index: 3, kind: input, shape index: {}]
  %s4 = inlined_call_operand.vmem [shape: f32[64,48], index: 4, kind: input, shape index: {}]
  %s5 = inlined_call_operand.vmem [shape: f32[1,48], index: 5, kind: input, shape index: {}]
  %s6 = inlined_call_operand.vmem [shape: f32[1,48], index: 6, kind: input, shape index: {}]
  %s7 = inlined_call_operand.vmem [shape: f32[48,32], index: 7, kind: input, shape index: {}]
  %s8 = inlined_call_operand.vmem [shape: f32[1,32], index: 8, kind: input, shape index: {}]
  %s9 = inlined_call_operand.vmem [shape: f32[8,32], index: 9, kind: output, shape index: {}]
  %s10 = sld [smem:[#allocation0]]
  $region46: #{_forward_impl.1} parent=0
    _
  %s12 = ssub.s32 1, %s10
  %s13 = scalar_select 0, %s12, %s10
  // Predicated region
  $region2: #{_forward_impl.1} parent=0 // pred_check
    _
  $region3: #{_forward_impl.1} parent=0 // pred_check_branch
    %15 = sbr.rel (0) target = $region5
  $region4: #{_forward_impl.1} parent=0 // pred_region
    _
  $region5: #{_forward_impl.1} parent=0 // pred_fallthru
    _
  // Predicated region
  $region6: #{_forward_impl.1} parent=0 // pred_check
    _
  $region7: #{_forward_impl.1} parent=0 // pred_check_branch
    %17 = sbr.rel (0) target = $region9
  $region8: #{_forward_impl.1} parent=0 // pred_region
    _
  $region9: #{_forward_impl.1} parent=0 // pred_fallthru
    _
  // Predicated region
  $region10: #{_forward_impl.1} parent=0 // pred_check
    _
  $region11: #{_forward_impl.1} parent=0 // pred_check_branch
    %19 = sbr.rel (0) target = $region13
  $region12: #{_forward_impl.1} parent=0 // pred_region
    _
  $region13: #{_forward_impl.1} parent=0 // pred_fallthru
    _
  // Predicated region
  $region14: #{_forward_impl.1} parent=0 // pred_check
    _
  $region15: #{_forward_impl.1} parent=0 // pred_check_branch
    %21 = sbr.rel (0) target = $region17
  $region16: #{_forward_impl.1} parent=0 // pred_region
    _
  $region17: #{_forward_impl.1} parent=0 // pred_fallthru
    _
  // Predicated region
  $region18: #{_forward_impl.1} parent=0 // pred_check
    _
  $region19: #{_forward_impl.1} parent=0 // pred_check_branch
    %23 = sbr.rel (0) target = $region21
  $region20: #{_forward_impl.1} parent=0 // pred_region
    _
  $region21: #{_forward_impl.1} parent=0 // pred_fallthru
    _
  // Predicated region
  $region22: #{_forward_impl.1} parent=0 // pred_check
    _
  $region23: #{_forward_impl.1} parent=0 // pred_check_branch
    %25 = sbr.rel (0) target = $region25
  $region24: #{_forward_impl.1} parent=0 // pred_region
    _
  $region25: #{_forward_impl.1} parent=0 // pred_fallthru
    _
  // Predicated region
  $region26: #{_forward_impl.1} parent=0 // pred_check
    _
  $region27: #{_forward_impl.1} parent=0 // pred_check_branch
    %27 = sbr.rel (0) target = $region29
  $region28: #{_forward_impl.1} parent=0 // pred_region
    _
  $region29: #{_forward_impl.1} parent=0 // pred_fallthru
    _
  // Predicated region
  $region30: #{_forward_impl.1} parent=0 // pred_check
    _
  $region31: #{_forward_impl.1} parent=0 // pred_check_branch
    %29 = sbr.rel (0) target = $region33
  $region32: #{_forward_impl.1} parent=0 // pred_region
    _
  $region33: #{_forward_impl.1} parent=0 // pred_fallthru
    _
  // Predicated region
  $region34: #{_forward_impl.1} parent=0 // pred_check
    _
  $region35: #{_forward_impl.1} parent=0 // pred_check_branch
    %31 = sbr.rel (0) target = $region37
  $region36: #{_forward_impl.1} parent=0 // pred_region
    _
  $region37: #{_forward_impl.1} parent=0 // pred_fallthru
    _
  %v32 = vld [vmem:[%s0] sm:$0xff]
  %v33 = vld [vmem:[%s1] sm:$0xff]
  %v34 = vld [vmem:[%s1 + $0x8] sm:$0xff]
  %v35 = vld [vmem:[%s1 + $0x10] sm:$0xff]
  %v36 = vld [vmem:[%s1 + $0x18] sm:$0xff]
  %vm37 = vcmask 261120
  %v39 = vsel %vm37, %v32, 0
  %41 = vmatpush.msra.mxu0 0.0
  %42 = vmatpush.msra.mxu0 0.0
  %43 = vmatpush.msra.mxu0 0.0
  %44 = vmatpush.msra.mxu0 0.0
  %45 = vmatpush.msra.mxu0 0.0
  %46 = vmatpush.msra.mxu0 0.0
  %47 = vmatpush.msra.mxu0 0.0
  %48 = vmatpush.msra.mxu0 0.0
  %49 = vmatpush.msra.mxu0 0.0
  %50 = vmatpush.msra.mxu0 0.0
  %51 = vmatpush.msra.mxu0 0.0
  %52 = vmatpush.msra.mxu0 0.0
  %53 = vmatpush.msra.mxu0 %v36
  %54 = vmatpush.msra.mxu0 %v35
  %55 = vmatpush.msra.mxu0 %v34
  %56 = vmatpush.msra.mxu0 %v33
  %57 = vmatmul.f32.gmra.mxu0 %v39
  %v58 = vpop.f32.mrf.mxu0
  %v59 = vadd.f32 0.0, %v58
  %60 = vdwg.mxu0
  %vm61 = vcmask 523264
  %v62 = vsel %vm61, %v59, 0.0
  %v63 = vrot.slane %v62, 4
  %v64 = vadd.f32 %v62, %v63
  %v65 = vrot.slane %v64, 2
  %v66 = vadd.f32 %v64, %v65
  %v67 = vrot.slane %v66, 1
  %v68 = vadd.f32 %v66, %v67
  %v69 = vrcp.pop 8.0
  %v70 = vmul.f32 8.0, %v69
  %v71 = vsub.f32 1.0, %v70
  %v72 = vmul.f32 %v69, %v71
  %v73 = vadd.f32 %v69, %v72
  %vm74 = vweird.f32 %v69
  %v75 = vsel %vm74, %v69, %v73
  %v76 = vmul.f32 %v68, %v75
  %v77 = vsub.f32 %v59, %v76
  %v78 = vmul.f32 %v77, %v77
  %v79 = vsel %vm61, %v78, 0.0
  %v80 = vrot.slane %v79, 4
  %v81 = vadd.f32 %v79, %v80
  %v82 = vrot.slane %v81, 2
  %v83 = vadd.f32 %v81, %v82
  %v84 = vrot.slane %v83, 1
  %v85 = vadd.f32 %v83, %v84
  %v86 = vmul.f32 %v85, %v75
  %v87 = vld [vmem:[%s2] sm:$0x1]
  %v88 = vadd.f32 %v86, 1e-05
  %v89 = vrsqrt.pop %v88
  %v90 = vmul.f32 %v89, %v88
  %v91 = vmul.f32 %v90, %v89
  %v92 = vmul.f32 0.5, %v91
  %v93 = vsub.f32 1.5, %v92
  %v94 = vmul.f32 %v89, %v93
  %vm95 = vweird.f32 %v88
  %vm96 = vweird.f32 %v89
  %vm97 = vmor %vm95, %vm96
  %v98 = vsel %vm97, %v89, %v94
  %v99 = vmul.f32 %v87, %v98
  %v100 = vld [vmem:[%s3] sm:$0x1]
  %v101 = vmul.f32 %v76, %v99
  %v102 = vsub.f32 %v100, %v101
  %v104 = vperm.slane %v99, 0
  %v106 = vmul.f32 %v59, %v104
  %v108 = vperm.slane %v102, 0
  %v110 = vadd.f32 %v106, %v108
  %vm111 = vcmp.ge.f32.partialorder %v110, 0.0
  %v112 = vmul.f32 %v110, 0.2
  %v113 = vsel %vm111, %v110, %v112
  %v114 = vld [vmem:[%s4] sm:$0xff]
  %v115 = vld [vmem:[%s4 + $0x8] sm:$0xff]
  %v116 = vld [vmem:[%s4 + $0x10] sm:$0xff]
  %v117 = vld [vmem:[%s4 + $0x18] sm:$0xff]
  %v118 = vld [vmem:[%s4 + $0x20] sm:$0xff]
  %v119 = vld [vmem:[%s4 + $0x28] sm:$0xff]
  %v120 = vld [vmem:[%s4 + $0x30] sm:$0xff]
  %v121 = vld [vmem:[%s4 + $0x38] sm:$0xff]
  %v123 = vsel %vm61, %v113, 0
  %125 = vmatpush.msra.mxu0 0.0
  %126 = vmatpush.msra.mxu0 0.0
  %127 = vmatpush.msra.mxu0 0.0
  %128 = vmatpush.msra.mxu0 0.0
  %129 = vmatpush.msra.mxu0 0.0
  %130 = vmatpush.msra.mxu0 0.0
  %131 = vmatpush.msra.mxu0 0.0
  %132 = vmatpush.msra.mxu0 0.0
  %133 = vmatpush.msra.mxu0 %v121
  %134 = vmatpush.msra.mxu0 %v120
  %135 = vmatpush.msra.mxu0 %v119
  %136 = vmatpush.msra.mxu0 %v118
  %137 = vmatpush.msra.mxu0 %v117
  %138 = vmatpush.msra.mxu0 %v116
  %139 = vmatpush.msra.mxu0 %v115
  %140 = vmatpush.msra.mxu0 %v114
  %141 = vmatmul.f32.gmra.mxu0 %v123
  %v142 = vpop.f32.mrf.mxu0
  %v143 = vadd.f32 0.0, %v142
  %144 = vdwg.mxu0
  %vm145 = vcmask 392192
  %v146 = vsel %vm145, %v143, 0.0
  %v147 = vrot.slane %v146, 4
  %v148 = vadd.f32 %v146, %v147
  %v149 = vrot.slane %v148, 2
  %v150 = vadd.f32 %v148, %v149
  %v151 = vrot.slane %v150, 1
  %v152 = vadd.f32 %v150, %v151
  %v153 = vmul.f32 %v152, %v75
  %v154 = vsub.f32 %v143, %v153
  %v155 = vmul.f32 %v154, %v154
  %v156 = vsel %vm145, %v155, 0.0
  %v157 = vrot.slane %v156, 4
  %v158 = vadd.f32 %v156, %v157
  %v159 = vrot.slane %v158, 2
  %v160 = vadd.f32 %v158, %v159
  %v161 = vrot.slane %v160, 1
  %v162 = vadd.f32 %v160, %v161
  %v163 = vmul.f32 %v162, %v75
  %v164 = vld [vmem:[%s5] sm:$0x1]
  %v165 = vadd.f32 %v163, 1e-05
  %v166 = vrsqrt.pop %v165
  %v167 = vmul.f32 %v166, %v165
  %v168 = vmul.f32 %v167, %v166
  %v169 = vmul.f32 0.5, %v168
  %v170 = vsub.f32 1.5, %v169
  %v171 = vmul.f32 %v166, %v170
  %vm172 = vweird.f32 %v165
  %vm173 = vweird.f32 %v166
  %vm174 = vmor %vm172, %vm173
  %v175 = vsel %vm174, %v166, %v171
  %v176 = vmul.f32 %v164, %v175
  %v177 = vld [vmem:[%s6] sm:$0x1]
  %v178 = vmul.f32 %v153, %v176
  %v179 = vsub.f32 %v177, %v178
  %v181 = vperm.slane %v176, 0
  %v183 = vmul.f32 %v143, %v181
  %v185 = vperm.slane %v179, 0
  %v187 = vadd.f32 %v183, %v185
  %vm188 = vcmp.ge.f32.partialorder %v187, 0.0
  %v189 = vmul.f32 %v187, 0.2
  %v190 = vsel %vm188, %v187, %v189
  %v191 = vld [vmem:[%s7] sm:$0xff]
  %v192 = vld [vmem:[%s7 + $0x8] sm:$0xff]
  %v193 = vld [vmem:[%s7 + $0x10] sm:$0xff]
  %v194 = vld [vmem:[%s7 + $0x18] sm:$0xff]
  %v195 = vld [vmem:[%s7 + $0x20] sm:$0xff]
  %v196 = vld [vmem:[%s7 + $0x28] sm:$0xff]
  %v197 = vld [vmem:[%s8] sm:$0x1]
  %v199 = vperm.slane %v197, 0
  %v202 = vsel %vm145, %v190, 0
  %204 = vmatpush.msra.mxu0 0.0
  %205 = vmatpush.msra.mxu0 0.0
  %206 = vmatpush.msra.mxu0 0.0
  %207 = vmatpush.msra.mxu0 0.0
  %208 = vmatpush.msra.mxu0 0.0
  %209 = vmatpush.msra.mxu0 0.0
  %210 = vmatpush.msra.mxu0 0.0
  %211 = vmatpush.msra.mxu0 0.0
  %212 = vmatpush.msra.mxu0 0.0
  %213 = vmatpush.msra.mxu0 0.0
  %214 = vmatpush.msra.mxu0 %v196
  %215 = vmatpush.msra.mxu0 %v195
  %216 = vmatpush.msra.mxu0 %v194
  %217 = vmatpush.msra.mxu0 %v193
  %218 = vmatpush.msra.mxu0 %v192
  %219 = vmatpush.msra.mxu0 %v191
  %220 = vmatmul.f32.gmra.mxu0 %v202
  %v221 = vpop.f32.mrf.mxu0
  %v222 = vadd.f32 %v199, %v221
  %223 = vdwg.mxu0
  %224 = vst.msk [vmem:[%s9] sm:$0xff] %vm37, %v222
  // Predicated region
  $region38: #{_forward_impl.1} parent=0 // pred_check
    _
  $region39: #{_forward_impl.1} parent=0 // pred_check_branch
    %226 = sbr.rel (0) target = $region41
  $region40: #{_forward_impl.1} parent=0 // pred_region
    _
  $region41: #{_forward_impl.1} parent=0 // pred_fallthru
    _
  // Predicated region
  $region42: #{_forward_impl.1} parent=0 // pred_check
    _
  $region43: #{_forward_impl.1} parent=0 // pred_check_branch
    %228 = sbr.rel (0) target = $region45
  $region44: #{_forward_impl.1} parent=0 // pred_region
    _
  $region45: #{_forward_impl.1} parent=0 // pred_fallthru
    _

</llo_original>
